<compile_context>
chip_gen: v6e
topology: v6e:2x2x1
jax: 0.10.0
libtpu: 0.0.40
codegen_flags: <defaults>
</compile_context>

<pallas_src>
import functools

import jax
import jax.numpy as jnp
from jax.experimental import pallas as pl
from jax.experimental.pallas import tpu as pltpu


def gcn_classifier_kernel(x_ref, adj_ref, w1_ref, w2_ref, lin_ref, out_ref):
    # Shapes (per grid step, BB = graphs folded into lanes):
    #   x_ref   : (1, N, BB*Fin)   bf16   [0, n, b*Fin + f] = x[b, n, f]
    #   adj_ref : (N, N)           bf16
    #   w1_ref  : (BB*Fin, BB*H1)  bf16   block-diagonal kron(I_BB, W1)
    #   w2_ref  : (BB*H1, BB*H2)   bf16   block-diagonal kron(I_BB, W2)
    #   lin_ref : (N, BB*H2)       f32    L tiled across the batch fold
    #   out_ref : (1, 1, BB*H2)    f32    [0, 0, b*H2 + j] = out[b, j]
    x = x_ref[0]            # (N, BB*Fin)
    adj = adj_ref[...]      # (N, N)
    w1 = w1_ref[...]
    w2 = w2_ref[...]
    lin = lin_ref[...]

    # gc1: h1 = relu(adj @ (x @ W1)); bf16 MXU operands, f32 accumulate.
    s1 = jnp.dot(x, w1, preferred_element_type=jnp.float32)             # (N, BB*H1)
    h1 = jnp.maximum(
        jnp.dot(adj, s1.astype(jnp.bfloat16),
                preferred_element_type=jnp.float32), 0.0)                # (N, BB*H1)

    # gc2: z = relu(adj @ (h1 @ W2))
    s2 = jnp.dot(h1.astype(jnp.bfloat16), w2,
                 preferred_element_type=jnp.float32)                     # (N, BB*H2)
    z = jnp.maximum(
        jnp.dot(adj, s2.astype(jnp.bfloat16),
                preferred_element_type=jnp.float32), 0.0)                # (N, BB*H2)

    # readout: out[b, j] = sum_n z[b, n, j] * L[n, j]
    # VPU multiply + sublane (XLU) reduce over N, all in f32.
    out = jnp.sum(z * lin, axis=0)                                       # (BB*H2,)
    out_ref[...] = out.reshape(out_ref.shape)


def prepare_gcn_params(adj, w1, w2, lin, *, block_b):
    """Parameter-only preprocessing. Depends on the weights and block_b only —
    call ONCE and reuse the result across forward passes (hoisted off the
    per-call hot path per the performance review)."""
    f32, bf16 = jnp.float32, jnp.bfloat16
    # Block-diagonal weights fold the batch into the lane dimension so the
    # kernel's feature matmuls stay plain 2-D and lane-dense.
    w1_bd = jnp.kron(jnp.eye(block_b, dtype=f32), w1.astype(f32)).astype(bf16)
    w2_bd = jnp.kron(jnp.eye(block_b, dtype=f32), w2.astype(f32)).astype(bf16)
    adj_b = adj.astype(bf16)
    lin_t = jnp.tile(lin.astype(f32), (1, block_b))          # (N, BB*H2)
    return adj_b, w1_bd, w2_bd, lin_t


@functools.partial(jax.jit, static_argnames=("block_b",))
def gcn_classifier_forward(x, adj_b, w1_bd, w2_bd, lin_t, *, block_b):
    """Per-call forward. jit'd so the x relayout fuses with the pallas_call."""
    B, N, Fin = x.shape
    BB = block_b
    assert B % BB == 0, "batch must be a multiple of block_b"
    G = B // BB
    H1 = w1_bd.shape[1] // BB
    H2 = lin_t.shape[1] // BB

    f32, bf16 = jnp.float32, jnp.bfloat16

    # x: (B, N, Fin) -> (G, N, BB*Fin) with [g, n, b*Fin + f] = x[g*BB + b, n, f]
    x_l = (x.astype(bf16)
             .transpose(1, 0, 2)              # (N, B, Fin)
             .reshape(N, G, BB, Fin)
             .transpose(1, 0, 2, 3)           # (G, N, BB, Fin)
             .reshape(G, N, BB * Fin))

    # Grid-invariant inputs: single-buffer them only when the grid actually
    # iterates (default pipelining is fine — and moot — at grid=(1,)).
    inv_kw = {} if G == 1 else {"pipeline_mode": pl.Buffered(1)}

    in_specs = [
        pl.BlockSpec((1, N, BB * Fin), lambda g: (g, 0, 0)),
        pl.BlockSpec((N, N), lambda g: (0, 0), **inv_kw),
        pl.BlockSpec((BB * Fin, BB * H1), lambda g: (0, 0), **inv_kw),
        pl.BlockSpec((BB * H1, BB * H2), lambda g: (0, 0), **inv_kw),
        pl.BlockSpec((N, BB * H2), lambda g: (0, 0), **inv_kw),
    ]

    # Advisory cost for XLA's scheduler (true math, not block-diag padding).
    flops = 2 * B * N * (Fin * H1 + N * H1 + H1 * H2 + N * H2)
    bytes_accessed = int(x_l.size * 2 + adj_b.size * 2 + w1_bd.size * 2
                         + w2_bd.size * 2 + lin_t.size * 4 + B * H2 * 4)

    out = pl.pallas_call(
        gcn_classifier_kernel,
        out_shape=jax.ShapeDtypeStruct((G, 1, BB * H2), f32),
        grid_spec=pltpu.PrefetchScalarGridSpec(
            num_scalar_prefetch=0,
            grid=(G,),
            in_specs=in_specs,
            out_specs=pl.BlockSpec((1, 1, BB * H2), lambda g: (g, 0, 0)),
        ),
        compiler_params=pltpu.CompilerParams(
            dimension_semantics=("arbitrary",)),
        cost_estimate=pl.CostEstimate(
            flops=flops, transcendentals=0, bytes_accessed=bytes_accessed),
    )(x_l, adj_b, w1_bd, w2_bd, lin_t)

    # (G, 1, BB*H2) -> (B, H2): row g*BB + b_local, column j.
    return out.reshape(B, H2)


if __name__ == "__main__":
    # Model hyperparameters (small, consistent with the module's __init__).
    B = 16              # batch of graphs
    N = 16              # number of graph nodes == adj_dim
    F_IN = 8            # input_feat_dim
    H1 = 32             # hidden_dim1
    H2 = 16             # hidden_dim2
    BLOCK_B = B         # whole batch in one grid step: BB*Fin=128, BB*H2=256

    key = jax.random.PRNGKey(0)
    kx, kadj, kw1, kw2, klin = jax.random.split(key, 5)

    # Deterministic synthetic inputs / parameters (Glorot-ish scaling).
    x = jax.random.normal(kx, (B, N, F_IN), dtype=jnp.float32)
    adj_raw = jax.random.uniform(kadj, (N, N), dtype=jnp.float32)
    adj = (adj_raw + adj_raw.T) * 0.5            # symmetric "adjacency"
    w1 = jax.random.normal(kw1, (F_IN, H1), dtype=jnp.float32) / jnp.sqrt(F_IN * 1.0)
    w2 = jax.random.normal(kw2, (H1, H2), dtype=jnp.float32) / jnp.sqrt(H1 * 1.0)
    lin = jax.random.normal(klin, (N, H2), dtype=jnp.float32) / jnp.sqrt(N * 1.0)

    # Parameter preprocessing: computed once, reused across calls.
    adj_b, w1_bd, w2_bd, lin_t = jax.block_until_ready(
        prepare_gcn_params(adj, w1, w2, lin, block_b=BLOCK_B))

    out = gcn_classifier_forward(x, adj_b, w1_bd, w2_bd, lin_t, block_b=BLOCK_B)
    out = jax.block_until_ready(out)
    assert out.shape == (B, H2)

    # ---- bf16-emulated reference (same quantization points as the kernel):
    # tight tolerance -> catches layout/indexing bugs the loose check would mask.
    bf = lambda v: v.astype(jnp.bfloat16)
    s1e = jnp.einsum('bnf,fh->bnh', bf(x), bf(w1),
                     preferred_element_type=jnp.float32)
    h1e = jnp.maximum(jnp.einsum('nm,bmh->bnh', bf(adj), bf(s1e),
                                 preferred_element_type=jnp.float32), 0.0)
    s2e = jnp.einsum('bnh,hk->bnk', bf(h1e), bf(w2),
                     preferred_element_type=jnp.float32)
    ze = jnp.maximum(jnp.einsum('nm,bmk->bnk', bf(adj), bf(s2e),
                                preferred_element_type=jnp.float32), 0.0)
    ref_bf16 = jnp.einsum('bnj,nj->bj', ze, lin)
    assert jnp.allclose(out, ref_bf16, rtol=2e-2, atol=2e-2), (
        float(jnp.max(jnp.abs(out - ref_bf16))))

    # ---- pure-f32 reference (original module semantics): loose tolerance for
    # bf16 MXU quantization only.
    s1 = jnp.einsum('bnf,fh->bnh', x, w1)
    h1 = jnp.maximum(jnp.einsum('nm,bmh->bnh', adj, s1), 0.0)
    s2 = jnp.einsum('bnh,hk->bnk', h1, w2)
    z = jnp.maximum(jnp.einsum('nm,bmk->bnk', adj, s2), 0.0)
    ref = jnp.einsum('bnj,nj->bj', z, lin)
    assert jnp.allclose(out, ref, rtol=5e-2, atol=5e-1), (
        float(jnp.max(jnp.abs(out - ref))))

    print("KERNEL_OK")
</pallas_src>

<mosaic_0001>
module attributes {stable_mosaic.version = 11 : i64} {
  func.func @gcn_classifier_kernel(%arg0: i32, %arg1: memref<1x16x128xbf16, #tpu.memory_space<vmem>>, %arg2: memref<16x16xbf16, #tpu.memory_space<vmem>>, %arg3: memref<128x512xbf16, #tpu.memory_space<vmem>>, %arg4: memref<512x256xbf16, #tpu.memory_space<vmem>>, %arg5: memref<16x256xf32, #tpu.memory_space<vmem>>, %arg6: memref<1x1x256xf32, #tpu.memory_space<vmem>>) attributes {dimension_semantics = [#tpu.dimension_semantics<arbitrary>], iteration_bounds = array<i64: 1>, scalar_prefetch = 0 : i64, scratch_operands = 0 : i64, tpu.core_type = #tpu.core_type<tc>, window_params = [{transform_indices = @transform_0, window_bounds = array<i64: 1, 16, 128>}, {pipeline_mode = #tpu.pipeline_mode<synchronous>, transform_indices = @transform_1, window_bounds = array<i64: 16, 16>}, {pipeline_mode = #tpu.pipeline_mode<synchronous>, transform_indices = @transform_2, window_bounds = array<i64: 128, 512>}, {pipeline_mode = #tpu.pipeline_mode<synchronous>, transform_indices = @transform_3, window_bounds = array<i64: 512, 256>}, {pipeline_mode = #tpu.pipeline_mode<synchronous>, transform_indices = @transform_4, window_bounds = array<i64: 16, 256>}, {transform_indices = @transform_5, window_bounds = array<i64: 1, 1, 256>}]} {
    %c0 = arith.constant 0 : index
    %c0_0 = arith.constant 0 : index
    %c0_1 = arith.constant 0 : index
    %0 = vector.load %arg1[%c0, %c0_0, %c0_1] : memref<1x16x128xbf16, #tpu.memory_space<vmem>>, vector<1x16x128xbf16>
    %1 = vector.shape_cast %0 : vector<1x16x128xbf16> to vector<16x128xbf16>
    %c0_2 = arith.constant 0 : index
    %c0_3 = arith.constant 0 : index
    %2 = vector.load %arg2[%c0_2, %c0_3] : memref<16x16xbf16, #tpu.memory_space<vmem>>, vector<16x16xbf16>
    %c0_4 = arith.constant 0 : index
    %c0_5 = arith.constant 0 : index
    %3 = vector.load %arg3[%c0_4, %c0_5] : memref<128x512xbf16, #tpu.memory_space<vmem>>, vector<128x512xbf16>
    %c0_6 = arith.constant 0 : index
    %c0_7 = arith.constant 0 : index
    %4 = vector.load %arg4[%c0_6, %c0_7] : memref<512x256xbf16, #tpu.memory_space<vmem>>, vector<512x256xbf16>
    %c0_8 = arith.constant 0 : index
    %c0_9 = arith.constant 0 : index
    %5 = vector.load %arg5[%c0_8, %c0_9] : memref<16x256xf32, #tpu.memory_space<vmem>>, vector<16x256xf32>
    %cst = arith.constant dense<0.000000e+00> : vector<16x512xf32>
    %6 = tpu.matmul %1, %3, %cst {dimension_numbers = #tpu.dot_dimension_numbers<[1], [0], [0], [1], [0, 0, 1, 1], [], []>} : vector<16x128xbf16>, vector<128x512xbf16>, vector<16x512xf32> -> vector<16x512xf32>
    %7 = arith.truncf %6 : vector<16x512xf32> to vector<16x512xbf16>
    %cst_10 = arith.constant dense<0.000000e+00> : vector<16x512xf32>
    %8 = tpu.matmul %2, %7, %cst_10 {dimension_numbers = #tpu.dot_dimension_numbers<[1], [0], [0], [1], [0, 0, 1, 1], [], []>} : vector<16x16xbf16>, vector<16x512xbf16>, vector<16x512xf32> -> vector<16x512xf32>
    %cst_11 = arith.constant 0.000000e+00 : f32
    %9 = vector.broadcast %cst_11 : f32 to vector<16x512xf32>
    %10 = arith.maximumf %8, %9 : vector<16x512xf32>
    %11 = arith.truncf %10 : vector<16x512xf32> to vector<16x512xbf16>
    %cst_12 = arith.constant dense<0.000000e+00> : vector<16x256xf32>
    %12 = tpu.matmul %11, %4, %cst_12 {dimension_numbers = #tpu.dot_dimension_numbers<[1], [0], [0], [1], [0, 0, 1, 1], [], []>} : vector<16x512xbf16>, vector<512x256xbf16>, vector<16x256xf32> -> vector<16x256xf32>
    %13 = arith.truncf %12 : vector<16x256xf32> to vector<16x256xbf16>
    %cst_13 = arith.constant dense<0.000000e+00> : vector<16x256xf32>
    %14 = tpu.matmul %2, %13, %cst_13 {dimension_numbers = #tpu.dot_dimension_numbers<[1], [0], [0], [1], [0, 0, 1, 1], [], []>} : vector<16x16xbf16>, vector<16x256xbf16>, vector<16x256xf32> -> vector<16x256xf32>
    %cst_14 = arith.constant 0.000000e+00 : f32
    %15 = vector.broadcast %cst_14 : f32 to vector<16x256xf32>
    %16 = arith.maximumf %14, %15 : vector<16x256xf32>
    %17 = arith.mulf %16, %5 : vector<16x256xf32>
    %cst_15 = arith.constant dense<0.000000e+00> : vector<256xf32>
    %18 = vector.multi_reduction <add>, %17, %cst_15 [0] : vector<16x256xf32> to vector<256xf32>
    %19 = vector.shape_cast %18 : vector<256xf32> to vector<1x1x256xf32>
    %c0_16 = arith.constant 0 : index
    %c0_17 = arith.constant 0 : index
    %c0_18 = arith.constant 0 : index
    %20 = vector.load %arg6[%c0_16, %c0_17, %c0_18] : memref<1x1x256xf32, #tpu.memory_space<vmem>>, vector<1x1x256xf32>
    tpu.vector_store %arg6[%c0_16, %c0_17, %c0_18], %19 {strides = array<i32>} : memref<1x1x256xf32, #tpu.memory_space<vmem>>, vector<1x1x256xf32>,
    return
  }
  func.func @transform_0(%arg0: i32) -> (i32, i32, i32) {
    %c0_i32 = arith.constant 0 : i32
    %c0_i32_0 = arith.constant 0 : i32
    %c0_i32_1 = arith.constant 0 : i32
    return %arg0, %c0_i32, %c0_i32_0 : i32, i32, i32
  }
  func.func @transform_1(%arg0: i32) -> (i32, i32) {
    %c0_i32 = arith.constant 0 : i32
    %c0_i32_0 = arith.constant 0 : i32
    %c0_i32_1 = arith.constant 0 : i32
    return %c0_i32, %c0_i32_0 : i32, i32
  }
  func.func @transform_2(%arg0: i32) -> (i32, i32) {
    %c0_i32 = arith.constant 0 : i32
    %c0_i32_0 = arith.constant 0 : i32
    %c0_i32_1 = arith.constant 0 : i32
    return %c0_i32, %c0_i32_0 : i32, i32
  }
  func.func @transform_3(%arg0: i32) -> (i32, i32) {
    %c0_i32 = arith.constant 0 : i32
    %c0_i32_0 = arith.constant 0 : i32
    %c0_i32_1 = arith.constant 0 : i32
    return %c0_i32, %c0_i32_0 : i32, i32
  }
  func.func @transform_4(%arg0: i32) -> (i32, i32) {
    %c0_i32 = arith.constant 0 : i32
    %c0_i32_0 = arith.constant 0 : i32
    %c0_i32_1 = arith.constant 0 : i32
    return %c0_i32, %c0_i32_0 : i32, i32
  }
  func.func @transform_5(%arg0: i32) -> (i32, i32, i32) {
    %c0_i32 = arith.constant 0 : i32
    %c0_i32_0 = arith.constant 0 : i32
    %c0_i32_1 = arith.constant 0 : i32
    return %arg0, %c0_i32, %c0_i32_0 : i32, i32, i32
  }
}

</mosaic_0001>

<llo_original>
// kernel: gcn_classifier_forward.1
$region0: #{gcn_classifier_forward.1}
  #allocation0 [shape = 'u32[]', space=smem, size = 0x4, offset = 0x4, fixed_abs, tag = 'smem constant byte address 0x4 - core index']
  #allocation1 [shape = 'u32[144,128]{1,0:T(1,128)}', space=vmem, size = 0x12000, scoped, tag = 'internal scratch']
  %s0 = inlined_call_operand.vmem [shape: bf16[1,16,128], index: 0, kind: input, shape index: {}]
  %s1 = inlined_call_operand.vmem [shape: bf16[16,16], index: 1, kind: input, shape index: {}]
  %s2 = inlined_call_operand.vmem [shape: bf16[128,512], index: 2, kind: input, shape index: {}]
  %s3 = inlined_call_operand.hbm [shape: bf16[512,256], index: 3, kind: input, shape index: {}]
  %s4 = inlined_call_operand.hbm [shape: f32[16,256], index: 4, kind: input, shape index: {}]
  %s5 = inlined_call_operand.vmem [shape: f32[1,1,256], index: 5, kind: output, shape index: {}]
  %s6 = sld [smem:[#allocation0]]
  $region38: #{gcn_classifier_forward.1} parent=0
    _
  %s8 = ssub.s32 1, %s6
  %s9 = scalar_select 0, %s8, %s6
  $region1: #{gcn_classifier_forward.1} parent=0
    #allocation2 [shape = 'u8[262144]{0}', space=vmem, size = 0x40000, scoped, tag = 'input window, operand 3, single buffered']
    #allocation3 [shape = 's32[1]{0}', space=sflag, size = 0x4, scoped, tag = 'scoped memory for gcn_classifier_forward.1']
    #allocation4 [shape = 'u8[16384]{0}', space=vmem, size = 0x4000, scoped, tag = 'input window, operand 4, single buffered']
    #allocation5 [shape = 's32[1]{0}', space=sflag, size = 0x4, scoped, tag = 'scoped memory for gcn_classifier_forward.1']
    %10 = vsyncpa [#allocation3], 0
    %11 = vsyncpa [#allocation5], 0
    // Predicated region
    $region2: #{gcn_classifier_forward.1} parent=1 // pred_check
      _
    $region3: #{gcn_classifier_forward.1} parent=1 // pred_check_branch
      %13 = sbr.rel (0) target = $region5
    $region4: #{gcn_classifier_forward.1} parent=1 // pred_region
      _
    $region5: #{gcn_classifier_forward.1} parent=1 // pred_fallthru
      _
    // Predicated region
    $region6: #{gcn_classifier_forward.1} parent=1 // pred_check
      _
    $region7: #{gcn_classifier_forward.1} parent=1 // pred_check_branch
      %15 = sbr.rel (0) target = $region9
    $region8: #{gcn_classifier_forward.1} parent=1 // pred_region
      _
    $region9: #{gcn_classifier_forward.1} parent=1 // pred_fallthru
      _
    // Predicated region
    $region10: #{gcn_classifier_forward.1} parent=1 // pred_check
      _
    $region11: #{gcn_classifier_forward.1} parent=1 // pred_check_branch
      %17 = sbr.rel (0) target = $region13
    $region12: #{gcn_classifier_forward.1} parent=1 // pred_region
      _
    $region13: #{gcn_classifier_forward.1} parent=1 // pred_fallthru
      _
    // Predicated region
    $region14: #{gcn_classifier_forward.1} parent=1 // pred_check
      _
    $region15: #{gcn_classifier_forward.1} parent=1 // pred_check_branch
      %19 = sbr.rel (0) target = $region17
    $region16: #{gcn_classifier_forward.1} parent=1 // pred_region
      %s21 = ssub.s32 8192, 8192
      %22 = vsyncadd [#allocation3], %s21
      %s23 = sshll.u32 [#allocation2], 4
      %s24 = int_to_ptr.vmem [resolvable:$true] %s23
      %29 = dma.hbm_to_vmem [thread:$0]  %s3, 8192, %s24, [#allocation3], 128, 128, 8
    $region17: #{gcn_classifier_forward.1} parent=1 // pred_fallthru
      _
    // Predicated region
    $region18: #{gcn_classifier_forward.1} parent=1 // pred_check
      _
    $region19: #{gcn_classifier_forward.1} parent=1 // pred_check_branch
      %31 = sbr.rel (0) target = $region21
    $region20: #{gcn_classifier_forward.1} parent=1 // pred_region
      %s33 = ssub.s32 512, 512
      %34 = vsyncadd [#allocation5], %s33
      %s35 = sshll.u32 [#allocation4], 4
      %s36 = int_to_ptr.vmem [resolvable:$true] %s35
      %41 = dma.hbm_to_vmem [thread:$0]  %s4, 512, %s36, [#allocation5], 256, 256, 16
    $region21: #{gcn_classifier_forward.1} parent=1 // pred_fallthru
      _
    // Predicated region
    $region22: #{gcn_classifier_forward.1} parent=1 // pred_check
      _
    $region23: #{gcn_classifier_forward.1} parent=1 // pred_check_branch
      %43 = sbr.rel (0) target = $region25
    $region24: #{gcn_classifier_forward.1} parent=1 // pred_region
      %44 = dma.done [#allocation3], 8192
    $region25: #{gcn_classifier_forward.1} parent=1 // pred_fallthru
      _
    // Predicated region
    $region26: #{gcn_classifier_forward.1} parent=1 // pred_check
      _
    $region27: #{gcn_classifier_forward.1} parent=1 // pred_check_branch
      %46 = sbr.rel (0) target = $region29
    $region28: #{gcn_classifier_forward.1} parent=1 // pred_region
      %47 = dma.done [#allocation5], 512
    $region29: #{gcn_classifier_forward.1} parent=1 // pred_fallthru
      _
    %v49 = vld [vmem:[%s0] sm:$0xf]
    %v50 = vld [vmem:[%s0 + $0x4] sm:$0xf]
    %v51 = vld [vmem:[%s1] sm:$0xf]
    %v52 = vld [vmem:[%s1 + $0x4] sm:$0xf]
    %v53 = vld [vmem:[%s2] sm:$0xff]
    %v54 = vld [vmem:[%s2 + $0x8] sm:$0xff]
    %v55 = vld [vmem:[%s2 + $0x10] sm:$0xff]
    %v56 = vld [vmem:[%s2 + $0x18] sm:$0xff]
    %v57 = vld [vmem:[%s2 + $0x20] sm:$0xff]
    %v58 = vld [vmem:[%s2 + $0x28] sm:$0xff]
    %v59 = vld [vmem:[%s2 + $0x30] sm:$0xff]
    %v60 = vld [vmem:[%s2 + $0x38] sm:$0xff]
    %v61 = vld [vmem:[%s2 + $0x40] sm:$0xff]
    %v62 = vld [vmem:[%s2 + $0x48] sm:$0xff]
    %v63 = vld [vmem:[%s2 + $0x50] sm:$0xff]
    %v64 = vld [vmem:[%s2 + $0x58] sm:$0xff]
    %v65 = vld [vmem:[%s2 + $0x60] sm:$0xff]
    %v66 = vld [vmem:[%s2 + $0x68] sm:$0xff]
    %v67 = vld [vmem:[%s2 + $0x70] sm:$0xff]
    %v68 = vld [vmem:[%s2 + $0x78] sm:$0xff]
    %v69 = vld [vmem:[%s2 + $0x80] sm:$0xff]
    %v70 = vld [vmem:[%s2 + $0x88] sm:$0xff]
    %v71 = vld [vmem:[%s2 + $0x90] sm:$0xff]
    %v72 = vld [vmem:[%s2 + $0x98] sm:$0xff]
    %v73 = vld [vmem:[%s2 + $0xa0] sm:$0xff]
    %v74 = vld [vmem:[%s2 + $0xa8] sm:$0xff]
    %v75 = vld [vmem:[%s2 + $0xb0] sm:$0xff]
    %v76 = vld [vmem:[%s2 + $0xb8] sm:$0xff]
    %v77 = vld [vmem:[%s2 + $0xc0] sm:$0xff]
    %v78 = vld [vmem:[%s2 + $0xc8] sm:$0xff]
    %v79 = vld [vmem:[%s2 + $0xd0] sm:$0xff]
    %v80 = vld [vmem:[%s2 + $0xd8] sm:$0xff]
    %v81 = vld [vmem:[%s2 + $0xe0] sm:$0xff]
    %v82 = vld [vmem:[%s2 + $0xe8] sm:$0xff]
    %v83 = vld [vmem:[%s2 + $0xf0] sm:$0xff]
    %v84 = vld [vmem:[%s2 + $0xf8] sm:$0xff]
    %v85 = vld [vmem:[#allocation2] sm:$0xff]
    %v86 = vld [vmem:[#allocation2 + $0x8] sm:$0xff]
    %v87 = vld [vmem:[#allocation2 + $0x10] sm:$0xff]
    %v88 = vld [vmem:[#allocation2 + $0x18] sm:$0xff]
    %v89 = vld [vmem:[#allocation2 + $0x20] sm:$0xff]
    %v90 = vld [vmem:[#allocation2 + $0x28] sm:$0xff]
    %v91 = vld [vmem:[#allocation2 + $0x30] sm:$0xff]
    %v92 = vld [vmem:[#allocation2 + $0x38] sm:$0xff]
    %v93 = vld [vmem:[#allocation2 + $0x40] sm:$0xff]
    %v94 = vld [vmem:[#allocation2 + $0x48] sm:$0xff]
    %v95 = vld [vmem:[#allocation2 + $0x50] sm:$0xff]
    %v96 = vld [vmem:[#allocation2 + $0x58] sm:$0xff]
    %v97 = vld [vmem:[#allocation2 + $0x60] sm:$0xff]
    %v98 = vld [vmem:[#allocation2 + $0x68] sm:$0xff]
    %v99 = vld [vmem:[#allocation2 + $0x70] sm:$0xff]
    %v100 = vld [vmem:[#allocation2 + $0x78] sm:$0xff]
    %v101 = vld [vmem:[#allocation2 + $0x80] sm:$0xff]
    %v102 = vld [vmem:[#allocation2 + $0x88] sm:$0xff]
    %v103 = vld [vmem:[#allocation2 + $0x90] sm:$0xff]
    %v104 = vld [vmem:[#allocation2 + $0x98] sm:$0xff]
    %v105 = vld [vmem:[#allocation2 + $0xa0] sm:$0xff]
    %v106 = vld [vmem:[#allocation2 + $0xa8] sm:$0xff]
    %v107 = vld [vmem:[#allocation2 + $0xb0] sm:$0xff]
    %v108 = vld [vmem:[#allocation2 + $0xb8] sm:$0xff]
    %v109 = vld [vmem:[#allocation2 + $0xc0] sm:$0xff]
    %v110 = vld [vmem:[#allocation2 + $0xc8] sm:$0xff]
    %v111 = vld [vmem:[#allocation2 + $0xd0] sm:$0xff]
    %v112 = vld [vmem:[#allocation2 + $0xd8] sm:$0xff]
    %v113 = vld [vmem:[#allocation2 + $0xe0] sm:$0xff]
    %v114 = vld [vmem:[#allocation2 + $0xe8] sm:$0xff]
    %v115 = vld [vmem:[#allocation2 + $0xf0] sm:$0xff]
    %v116 = vld [vmem:[#allocation2 + $0xf8] sm:$0xff]
    %v117 = vld [vmem:[#allocation2 + $0x100] sm:$0xff]
    %v118 = vld [vmem:[#allocation2 + $0x108] sm:$0xff]
    %v119 = vld [vmem:[#allocation2 + $0x110] sm:$0xff]
    %v120 = vld [vmem:[#allocation2 + $0x118] sm:$0xff]
    %v121 = vld [vmem:[#allocation2 + $0x120] sm:$0xff]
    %v122 = vld [vmem:[#allocation2 + $0x128] sm:$0xff]
    %v123 = vld [vmem:[#allocation2 + $0x130] sm:$0xff]
    %v124 = vld [vmem:[#allocation2 + $0x138] sm:$0xff]
    %v125 = vld [vmem:[#allocation2 + $0x140] sm:$0xff]
    %v126 = vld [vmem:[#allocation2 + $0x148] sm:$0xff]
    %v127 = vld [vmem:[#allocation2 + $0x150] sm:$0xff]
    %v128 = vld [vmem:[#allocation2 + $0x158] sm:$0xff]
    %v129 = vld [vmem:[#allocation2 + $0x160] sm:$0xff]
    %v130 = vld [vmem:[#allocation2 + $0x168] sm:$0xff]
    %v131 = vld [vmem:[#allocation2 + $0x170] sm:$0xff]
    %v132 = vld [vmem:[#allocation2 + $0x178] sm:$0xff]
    %v133 = vld [vmem:[#allocation2 + $0x180] sm:$0xff]
    %v134 = vld [vmem:[#allocation2 + $0x188] sm:$0xff]
    %v135 = vld [vmem:[#allocation2 + $0x190] sm:$0xff]
    %v136 = vld [vmem:[#allocation2 + $0x198] sm:$0xff]
    %v137 = vld [vmem:[#allocation2 + $0x1a0] sm:$0xff]
    %v138 = vld [vmem:[#allocation2 + $0x1a8] sm:$0xff]
    %v139 = vld [vmem:[#allocation2 + $0x1b0] sm:$0xff]
    %v140 = vld [vmem:[#allocation2 + $0x1b8] sm:$0xff]
    %v141 = vld [vmem:[#allocation2 + $0x1c0] sm:$0xff]
    %v142 = vld [vmem:[#allocation2 + $0x1c8] sm:$0xff]
    %v143 = vld [vmem:[#allocation2 + $0x1d0] sm:$0xff]
    %v144 = vld [vmem:[#allocation2 + $0x1d8] sm:$0xff]
    %v145 = vld [vmem:[#allocation2 + $0x1e0] sm:$0xff]
    %v146 = vld [vmem:[#allocation2 + $0x1e8] sm:$0xff]
    %v147 = vld [vmem:[#allocation2 + $0x1f0] sm:$0xff]
    %v148 = vld [vmem:[#allocation2 + $0x1f8] sm:$0xff]
    %v149 = vld [vmem:[#allocation4] sm:$0xff]
    %v150 = vld [vmem:[#allocation4 + $0x8] sm:$0xff]
    %v151 = vld [vmem:[#allocation4 + $0x10] sm:$0xff]
    %v152 = vld [vmem:[#allocation4 + $0x18] sm:$0xff]
    %v155 = vunpack.c.l.b16 %v49
    %v156 = vunpack.c.l.b16 %v50
    %v157 = vpack.c.b16 %v156, %v155
    %v191 = vunpack.c.l.b16 %v53
    %v192 = vunpack.c.h.b16 %v53
    %v193 = vunpack.c.l.b16 %v54
    %v194 = vunpack.c.h.b16 %v54
    %v195 = vunpack.c.l.b16 %v55
    %v196 = vunpack.c.h.b16 %v55
    %v197 = vunpack.c.l.b16 %v56
    %v198 = vunpack.c.h.b16 %v56
    %v199 = vunpack.c.l.b16 %v57
    %v200 = vunpack.c.h.b16 %v57
    %v201 = vunpack.c.l.b16 %v58
    %v202 = vunpack.c.h.b16 %v58
    %v203 = vunpack.c.l.b16 %v59
    %v204 = vunpack.c.h.b16 %v59
    %v205 = vunpack.c.l.b16 %v60
    %v206 = vunpack.c.h.b16 %v60
    %v207 = vunpack.c.l.b16 %v61
    %v208 = vunpack.c.h.b16 %v61
    %v209 = vunpack.c.l.b16 %v62
    %v210 = vunpack.c.h.b16 %v62
    %v211 = vunpack.c.l.b16 %v63
    %v212 = vunpack.c.h.b16 %v63
    %v213 = vunpack.c.l.b16 %v64
    %v214 = vunpack.c.h.b16 %v64
    %v215 = vunpack.c.l.b16 %v65
    %v216 = vunpack.c.h.b16 %v65
    %v217 = vunpack.c.l.b16 %v66
    %v218 = vunpack.c.h.b16 %v66
    %v219 = vunpack.c.l.b16 %v67
    %v220 = vunpack.c.h.b16 %v67
    %v221 = vunpack.c.l.b16 %v68
    %v222 = vunpack.c.h.b16 %v68
    %v223 = vunpack.c.l.b16 %v69
    %v224 = vunpack.c.h.b16 %v69
    %v225 = vunpack.c.l.b16 %v70
    %v226 = vunpack.c.h.b16 %v70
    %v227 = vunpack.c.l.b16 %v71
    %v228 = vunpack.c.h.b16 %v71
    %v229 = vunpack.c.l.b16 %v72
    %v230 = vunpack.c.h.b16 %v72
    %v231 = vunpack.c.l.b16 %v73
    %v232 = vunpack.c.h.b16 %v73
    %v233 = vunpack.c.l.b16 %v74
    %v234 = vunpack.c.h.b16 %v74
    %v235 = vunpack.c.l.b16 %v75
    %v236 = vunpack.c.h.b16 %v75
    %v237 = vunpack.c.l.b16 %v76
    %v238 = vunpack.c.h.b16 %v76
    %v239 = vunpack.c.l.b16 %v77
    %v240 = vunpack.c.h.b16 %v77
    %v241 = vunpack.c.l.b16 %v78
    %v242 = vunpack.c.h.b16 %v78
    %v243 = vunpack.c.l.b16 %v79
    %v244 = vunpack.c.h.b16 %v79
    %v245 = vunpack.c.l.b16 %v80
    %v246 = vunpack.c.h.b16 %v80
    %v247 = vunpack.c.l.b16 %v81
    %v248 = vunpack.c.h.b16 %v81
    %v249 = vunpack.c.l.b16 %v82
    %v250 = vunpack.c.h.b16 %v82
    %v251 = vunpack.c.l.b16 %v83
    %v252 = vunpack.c.h.b16 %v83
    %v253 = vunpack.c.l.b16 %v84
    %v254 = vunpack.c.h.b16 %v84
    %v255 = vpack.c.b16 %v195, %v191
    %v256 = vpack.c.b16 %v196, %v192
    %v257 = vpack.c.b16 %v197, %v193
    %v258 = vpack.c.b16 %v198, %v194
    %v259 = vpack.c.b16 %v203, %v199
    %v260 = vpack.c.b16 %v204, %v200
    %v261 = vpack.c.b16 %v205, %v201
    %v262 = vpack.c.b16 %v206, %v202
    %v263 = vpack.c.b16 %v211, %v207
    %v264 = vpack.c.b16 %v212, %v208
    %v265 = vpack.c.b16 %v213, %v209
    %v266 = vpack.c.b16 %v214, %v210
    %v267 = vpack.c.b16 %v219, %v215
    %v268 = vpack.c.b16 %v220, %v216
    %v269 = vpack.c.b16 %v221, %v217
    %v270 = vpack.c.b16 %v222, %v218
    %v271 = vpack.c.b16 %v227, %v223
    %v272 = vpack.c.b16 %v228, %v224
    %v273 = vpack.c.b16 %v229, %v225
    %v274 = vpack.c.b16 %v230, %v226
    %v275 = vpack.c.b16 %v235, %v231
    %v276 = vpack.c.b16 %v236, %v232
    %v277 = vpack.c.b16 %v237, %v233
    %v278 = vpack.c.b16 %v238, %v234
    %v279 = vpack.c.b16 %v243, %v239
    %v280 = vpack.c.b16 %v244, %v240
    %v281 = vpack.c.b16 %v245, %v241
    %v282 = vpack.c.b16 %v246, %v242
    %v283 = vpack.c.b16 %v251, %v247
    %v284 = vpack.c.b16 %v252, %v248
    %v285 = vpack.c.b16 %v253, %v249
    %v286 = vpack.c.b16 %v254, %v250
    %319 = vmatprep.subr.bf16.mxu0 %v284
    %320 = vmatpush1.bf16.msra.mxu0 %v283
    %321 = vmatprep.subr.bf16.mxu0 %v280
    %322 = vmatpush1.bf16.msra.mxu0 %v279
    %323 = vmatprep.subr.bf16.mxu0 %v276
    %324 = vmatpush1.bf16.msra.mxu0 %v275
    %325 = vmatprep.subr.bf16.mxu0 %v272
    %326 = vmatpush1.bf16.msra.mxu0 %v271
    %327 = vmatprep.subr.bf16.mxu0 %v268
    %328 = vmatpush1.bf16.msra.mxu0 %v267
    %329 = vmatprep.subr.bf16.mxu0 %v264
    %330 = vmatpush1.bf16.msra.mxu0 %v263
    %331 = vmatprep.subr.bf16.mxu0 %v260
    %332 = vmatpush1.bf16.msra.mxu0 %v259
    %333 = vmatprep.subr.bf16.mxu0 %v256
    %334 = vmatpush1.bf16.msra.mxu0 %v255
    %335 = vmatprep.subr.bf16.mxu0 0
    %336 = vmatpush2.bf16.msra.mxu0 0
    %337 = vmatprep.subr.bf16.mxu0 0
    %338 = vmatpush2.bf16.msra.mxu0 0
    %339 = vmatprep.subr.bf16.mxu0 0
    %340 = vmatpush2.bf16.msra.mxu0 0
    %341 = vmatprep.subr.bf16.mxu0 0
    %342 = vmatpush2.bf16.msra.mxu0 0
    %343 = vmatprep.subr.bf16.mxu0 0
    %344 = vmatpush2.bf16.msra.mxu0 0
    %345 = vmatprep.subr.bf16.mxu0 0
    %346 = vmatpush2.bf16.msra.mxu0 0
    %347 = vmatprep.subr.bf16.mxu0 0
    %348 = vmatpush2.bf16.msra.mxu0 0
    %349 = vmatprep.subr.bf16.mxu0 0
    %350 = vmatpush2.bf16.msra.mxu0 0
    %351 = vmatprep.mubr.bf16.mxu0 0
    %352 = vmatmul.mubr.bf16.gmra.mxu0 %v157
    %v353 = vpop.f32.mrf.mxu0
    %v354 = vadd.f32 0.0, %v353
    %v355 = vpop.f32.mrf.mxu0
    %v356 = vadd.f32 0.0, %v355
    %v357 = vpop.f32.mrf.mxu0
    %v358 = vadd.f32 0.0, %v357
    %v359 = vpop.f32.mrf.mxu0
    %v360 = vadd.f32 0.0, %v359
    %361 = vdwg.mxu0
    %362 = vmatprep.subr.bf16.mxu0 %v286
    %363 = vmatpush1.bf16.msra.mxu0 %v285
    %364 = vmatprep.subr.bf16.mxu0 %v282
    %365 = vmatpush1.bf16.msra.mxu0 %v281
    %366 = vmatprep.subr.bf16.mxu0 %v278
    %367 = vmatpush1.bf16.msra.mxu0 %v277
    %368 = vmatprep.subr.bf16.mxu0 %v274
    %369 = vmatpush1.bf16.msra.mxu0 %v273
    %370 = vmatprep.subr.bf16.mxu0 %v270
    %371 = vmatpush1.bf16.msra.mxu0 %v269
    %372 = vmatprep.subr.bf16.mxu0 %v266
    %373 = vmatpush1.bf16.msra.mxu0 %v265
    %374 = vmatprep.subr.bf16.mxu0 %v262
    %375 = vmatpush1.bf16.msra.mxu0 %v261
    %376 = vmatprep.subr.bf16.mxu0 %v258
    %377 = vmatpush1.bf16.msra.mxu0 %v257
    %378 = vmatprep.subr.bf16.mxu0 0
    %379 = vmatpush2.bf16.msra.mxu0 0
    %380 = vmatprep.subr.bf16.mxu0 0
    %381 = vmatpush2.bf16.msra.mxu0 0
    %382 = vmatprep.subr.bf16.mxu0 0
    %383 = vmatpush2.bf16.msra.mxu0 0
    %384 = vmatprep.subr.bf16.mxu0 0
    %385 = vmatpush2.bf16.msra.mxu0 0
    %386 = vmatprep.subr.bf16.mxu0 0
    %387 = vmatpush2.bf16.msra.mxu0 0
    %388 = vmatprep.subr.bf16.mxu0 0
    %389 = vmatpush2.bf16.msra.mxu0 0
    %390 = vmatprep.subr.bf16.mxu0 0
    %391 = vmatpush2.bf16.msra.mxu0 0
    %392 = vmatprep.subr.bf16.mxu0 0
    %393 = vmatpush2.bf16.msra.mxu0 0
    %394 = vmatprep.mubr.bf16.mxu0 0
    %395 = vmatmul.mubr.bf16.gmra.mxu0 %v157
    %v396 = vpop.f32.mrf.mxu0
    %v397 = vadd.f32 0.0, %v396
    %v398 = vpop.f32.mrf.mxu0
    %v399 = vadd.f32 0.0, %v398
    %v400 = vpop.f32.mrf.mxu0
    %v401 = vadd.f32 0.0, %v400
    %v402 = vpop.f32.mrf.mxu0
    %v403 = vadd.f32 0.0, %v402
    %404 = vdwg.mxu0
    %v405 = vpack.c.bf16 %v358, %v354
    %v406 = vpack.c.bf16 %v360, %v356
    %v407 = vpack.c.bf16 %v401, %v397
    %v408 = vpack.c.bf16 %v403, %v399
    %v411 = vunpack.c.l.b16 %v51
    %v412 = vunpack.c.l.b16 %v52
    %v413 = vpack.c.b16 %v412, %v411
    %vm414 = vcmask 130048
    %v416 = vsel %vm414, %v413, 0
    %418 = vmatprep.subr.bf16.mxu0 0
    %419 = vmatpush1.bf16.msra.mxu0 0
    %420 = vmatprep.subr.bf16.mxu0 0
    %421 = vmatpush1.bf16.msra.mxu0 0
    %422 = vmatprep.subr.bf16.mxu0 0
    %423 = vmatpush1.bf16.msra.mxu0 0
    %424 = vmatprep.subr.bf16.mxu0 0
    %425 = vmatpush1.bf16.msra.mxu0 0
    %426 = vmatprep.subr.bf16.mxu0 0
    %427 = vmatpush1.bf16.msra.mxu0 0
    %428 = vmatprep.subr.bf16.mxu0 0
    %429 = vmatpush1.bf16.msra.mxu0 0
    %430 = vmatprep.subr.bf16.mxu0 0
    %431 = vmatpush1.bf16.msra.mxu0 0
    %432 = vmatprep.subr.bf16.mxu0 %v406
    %433 = vmatpush1.bf16.msra.mxu0 %v405
    %434 = vmatprep.subr.bf16.mxu0 0
    %435 = vmatpush2.bf16.msra.mxu0 0
    %436 = vmatprep.subr.bf16.mxu0 0
    %437 = vmatpush2.bf16.msra.mxu0 0
    %438 = vmatprep.subr.bf16.mxu0 0
    %439 = vmatpush2.bf16.msra.mxu0 0
    %440 = vmatprep.subr.bf16.mxu0 0
    %441 = vmatpush2.bf16.msra.mxu0 0
    %442 = vmatprep.subr.bf16.mxu0 0
    %443 = vmatpush2.bf16.msra.mxu0 0
    %444 = vmatprep.subr.bf16.mxu0 0
    %445 = vmatpush2.bf16.msra.mxu0 0
    %446 = vmatprep.subr.bf16.mxu0 0
    %447 = vmatpush2.bf16.msra.mxu0 0
    %448 = vmatprep.subr.bf16.mxu0 0
    %449 = vmatpush2.bf16.msra.mxu0 0
    %450 = vmatprep.mubr.bf16.mxu0 0
    %451 = vmatmul.mubr.bf16.gmra.mxu0 %v416
    %v452 = vpop.f32.mrf.mxu0
    %v453 = vadd.f32 0.0, %v452
    %v454 = vpop.f32.mrf.mxu0
    %v455 = vadd.f32 0.0, %v454
    %v456 = vpop.f32.mrf.mxu0
    %v457 = vadd.f32 0.0, %v456
    %v458 = vpop.f32.mrf.mxu0
    %v459 = vadd.f32 0.0, %v458
    %460 = vdwg.mxu0
    %461 = vmatprep.subr.bf16.mxu0 0
    %462 = vmatpush1.bf16.msra.mxu0 0
    %463 = vmatprep.subr.bf16.mxu0 0
    %464 = vmatpush1.bf16.msra.mxu0 0
    %465 = vmatprep.subr.bf16.mxu0 0
    %466 = vmatpush1.bf16.msra.mxu0 0
    %467 = vmatprep.subr.bf16.mxu0 0
    %468 = vmatpush1.bf16.msra.mxu0 0
    %469 = vmatprep.subr.bf16.mxu0 0
    %470 = vmatpush1.bf16.msra.mxu0 0
    %471 = vmatprep.subr.bf16.mxu0 0
    %472 = vmatpush1.bf16.msra.mxu0 0
    %473 = vmatprep.subr.bf16.mxu0 0
    %474 = vmatpush1.bf16.msra.mxu0 0
    %475 = vmatprep.subr.bf16.mxu0 %v408
    %476 = vmatpush1.bf16.msra.mxu0 %v407
    %477 = vmatprep.subr.bf16.mxu0 0
    %478 = vmatpush2.bf16.msra.mxu0 0
    %479 = vmatprep.subr.bf16.mxu0 0
    %480 = vmatpush2.bf16.msra.mxu0 0
    %481 = vmatprep.subr.bf16.mxu0 0
    %482 = vmatpush2.bf16.msra.mxu0 0
    %483 = vmatprep.subr.bf16.mxu0 0
    %484 = vmatpush2.bf16.msra.mxu0 0
    %485 = vmatprep.subr.bf16.mxu0 0
    %486 = vmatpush2.bf16.msra.mxu0 0
    %487 = vmatprep.subr.bf16.mxu0 0
    %488 = vmatpush2.bf16.msra.mxu0 0
    %489 = vmatprep.subr.bf16.mxu0 0
    %490 = vmatpush2.bf16.msra.mxu0 0
    %491 = vmatprep.subr.bf16.mxu0 0
    %492 = vmatpush2.bf16.msra.mxu0 0
    %493 = vmatprep.mubr.bf16.mxu0 0
    %494 = vmatmul.mubr.bf16.gmra.mxu0 %v416
    %v495 = vpop.f32.mrf.mxu0
    %v496 = vadd.f32 0.0, %v495
    %v497 = vpop.f32.mrf.mxu0
    %v498 = vadd.f32 0.0, %v497
    %v499 = vpop.f32.mrf.mxu0
    %v500 = vadd.f32 0.0, %v499
    %v501 = vpop.f32.mrf.mxu0
    %v502 = vadd.f32 0.0, %v501
    %503 = vdwg.mxu0
    %v504 = vmax.f32 %v453, 0.0
    %v505 = vmax.f32 %v455, 0.0
    %v506 = vmax.f32 %v496, 0.0
    %v507 = vmax.f32 %v498, 0.0
    %v508 = vmax.f32 %v457, 0.0
    %v509 = vmax.f32 %v459, 0.0
    %v510 = vmax.f32 %v500, 0.0
    %v511 = vmax.f32 %v502, 0.0
    %v512 = vpack.c.bf16 %v508, %v504
    %v513 = vpack.c.bf16 %v509, %v505
    %v514 = vpack.c.bf16 %v510, %v506
    %v515 = vpack.c.bf16 %v511, %v507
    %v580 = vunpack.c.l.b16 %v85
    %v581 = vunpack.c.h.b16 %v85
    %v582 = vunpack.c.l.b16 %v86
    %v583 = vunpack.c.h.b16 %v86
    %v584 = vunpack.c.l.b16 %v87
    %v585 = vunpack.c.h.b16 %v87
    %v586 = vunpack.c.l.b16 %v88
    %v587 = vunpack.c.h.b16 %v88
    %v588 = vunpack.c.l.b16 %v89
    %v589 = vunpack.c.h.b16 %v89
    %v590 = vunpack.c.l.b16 %v90
    %v591 = vunpack.c.h.b16 %v90
    %v592 = vunpack.c.l.b16 %v91
    %v593 = vunpack.c.h.b16 %v91
    %v594 = vunpack.c.l.b16 %v92
    %v595 = vunpack.c.h.b16 %v92
    %v596 = vunpack.c.l.b16 %v93
    %v597 = vunpack.c.h.b16 %v93
    %v598 = vunpack.c.l.b16 %v94
    %v599 = vunpack.c.h.b16 %v94
    %v600 = vunpack.c.l.b16 %v95
    %v601 = vunpack.c.h.b16 %v95
    %v602 = vunpack.c.l.b16 %v96
    %v603 = vunpack.c.h.b16 %v96
    %v604 = vunpack.c.l.b16 %v97
    %v605 = vunpack.c.h.b16 %v97
    %v606 = vunpack.c.l.b16 %v98
    %v607 = vunpack.c.h.b16 %v98
    %v608 = vunpack.c.l.b16 %v99
    %v609 = vunpack.c.h.b16 %v99
    %v610 = vunpack.c.l.b16 %v100
    %v611 = vunpack.c.h.b16 %v100
    %v612 = vunpack.c.l.b16 %v101
    %v613 = vunpack.c.h.b16 %v101
    %v614 = vunpack.c.l.b16 %v102
    %v615 = vunpack.c.h.b16 %v102
    %v616 = vunpack.c.l.b16 %v103
    %v617 = vunpack.c.h.b16 %v103
    %v618 = vunpack.c.l.b16 %v104
    %v619 = vunpack.c.h.b16 %v104
    %v620 = vunpack.c.l.b16 %v105
    %v621 = vunpack.c.h.b16 %v105
    %v622 = vunpack.c.l.b16 %v106
    %v623 = vunpack.c.h.b16 %v106
    %v624 = vunpack.c.l.b16 %v107
    %v625 = vunpack.c.h.b16 %v107
    %v626 = vunpack.c.l.b16 %v108
    %v627 = vunpack.c.h.b16 %v108
    %v628 = vunpack.c.l.b16 %v109
    %v629 = vunpack.c.h.b16 %v109
    %v630 = vunpack.c.l.b16 %v110
    %v631 = vunpack.c.h.b16 %v110
    %v632 = vunpack.c.l.b16 %v111
    %v633 = vunpack.c.h.b16 %v111
    %v634 = vunpack.c.l.b16 %v112
    %v635 = vunpack.c.h.b16 %v112
    %v636 = vunpack.c.l.b16 %v113
    %v637 = vunpack.c.h.b16 %v113
    %v638 = vunpack.c.l.b16 %v114
    %v639 = vunpack.c.h.b16 %v114
    %v640 = vunpack.c.l.b16 %v115
    %v641 = vunpack.c.h.b16 %v115
    %v642 = vunpack.c.l.b16 %v116
    %v643 = vunpack.c.h.b16 %v116
    %v644 = vunpack.c.l.b16 %v117
    %v645 = vunpack.c.h.b16 %v117
    %v646 = vunpack.c.l.b16 %v118
    %v647 = vunpack.c.h.b16 %v118
    %v648 = vunpack.c.l.b16 %v119
    %v649 = vunpack.c.h.b16 %v119
    %v650 = vunpack.c.l.b16 %v120
    %v651 = vunpack.c.h.b16 %v120
    %v652 = vunpack.c.l.b16 %v121
    %v653 = vunpack.c.h.b16 %v121
    %v654 = vunpack.c.l.b16 %v122
    %v655 = vunpack.c.h.b16 %v122
    %v656 = vunpack.c.l.b16 %v123
    %v657 = vunpack.c.h.b16 %v123
    %v658 = vunpack.c.l.b16 %v124
    %v659 = vunpack.c.h.b16 %v124
    %v660 = vunpack.c.l.b16 %v125
    %v661 = vunpack.c.h.b16 %v125
    %v662 = vunpack.c.l.b16 %v126
    %v663 = vunpack.c.h.b16 %v126
    %v664 = vunpack.c.l.b16 %v127
    %v665 = vunpack.c.h.b16 %v127
    %v666 = vunpack.c.l.b16 %v128
    %v667 = vunpack.c.h.b16 %v128
    %v668 = vunpack.c.l.b16 %v129
    %v669 = vunpack.c.h.b16 %v129
    %v670 = vunpack.c.l.b16 %v130
    %v671 = vunpack.c.h.b16 %v130
    %v672 = vunpack.c.l.b16 %v131
    %v673 = vunpack.c.h.b16 %v131
    %v674 = vunpack.c.l.b16 %v132
    %v675 = vunpack.c.h.b16 %v132
    %v676 = vunpack.c.l.b16 %v133
    %v677 = vunpack.c.h.b16 %v133
    %v678 = vunpack.c.l.b16 %v134
    %v679 = vunpack.c.h.b16 %v134
    %v680 = vunpack.c.l.b16 %v135
    %v681 = vunpack.c.h.b16 %v135
    %v682 = vunpack.c.l.b16 %v136
    %v683 = vunpack.c.h.b16 %v136
    %v684 = vunpack.c.l.b16 %v137
    %v685 = vunpack.c.h.b16 %v137
    %v686 = vunpack.c.l.b16 %v138
    %v687 = vunpack.c.h.b16 %v138
    %v688 = vunpack.c.l.b16 %v139
    %v689 = vunpack.c.h.b16 %v139
    %v690 = vunpack.c.l.b16 %v140
    %v691 = vunpack.c.h.b16 %v140
    %v692 = vunpack.c.l.b16 %v141
    %v693 = vunpack.c.h.b16 %v141
    %v694 = vunpack.c.l.b16 %v142
    %v695 = vunpack.c.h.b16 %v142
    %v696 = vunpack.c.l.b16 %v143
    %v697 = vunpack.c.h.b16 %v143
    %v698 = vunpack.c.l.b16 %v144
    %v699 = vunpack.c.h.b16 %v144
    %v700 = vunpack.c.l.b16 %v145
    %v701 = vunpack.c.h.b16 %v145
    %v702 = vunpack.c.l.b16 %v146
    %v703 = vunpack.c.h.b16 %v146
    %v704 = vunpack.c.l.b16 %v147
    %v705 = vunpack.c.h.b16 %v147
    %v706 = vunpack.c.l.b16 %v148
    %v707 = vunpack.c.h.b16 %v148
    %v708 = vpack.c.b16 %v582, %v580
    %v709 = vpack.c.b16 %v583, %v581
    %v710 = vpack.c.b16 %v586, %v584
    %v711 = vpack.c.b16 %v587, %v585
    %v712 = vpack.c.b16 %v590, %v588
    %v713 = vpack.c.b16 %v591, %v589
    %v714 = vpack.c.b16 %v594, %v592
    %v715 = vpack.c.b16 %v595, %v593
    %v716 = vpack.c.b16 %v598, %v596
    %v717 = vpack.c.b16 %v599, %v597
    %v718 = vpack.c.b16 %v602, %v600
    %v719 = vpack.c.b16 %v603, %v601
    %v720 = vpack.c.b16 %v606, %v604
    %v721 = vpack.c.b16 %v607, %v605
    %v722 = vpack.c.b16 %v610, %v608
    %v723 = vpack.c.b16 %v611, %v609
    %v724 = vpack.c.b16 %v614, %v612
    %v725 = vpack.c.b16 %v615, %v613
    %v726 = vpack.c.b16 %v618, %v616
    %v727 = vpack.c.b16 %v619, %v617
    %v728 = vpack.c.b16 %v622, %v620
    %v729 = vpack.c.b16 %v623, %v621
    %v730 = vpack.c.b16 %v626, %v624
    %v731 = vpack.c.b16 %v627, %v625
    %v732 = vpack.c.b16 %v630, %v628
    %v733 = vpack.c.b16 %v631, %v629
    %v734 = vpack.c.b16 %v634, %v632
    %v735 = vpack.c.b16 %v635, %v633
    %v736 = vpack.c.b16 %v638, %v636
    %v737 = vpack.c.b16 %v639, %v637
    %v738 = vpack.c.b16 %v642, %v640
    %v739 = vpack.c.b16 %v643, %v641
    %v740 = vpack.c.b16 %v646, %v644
    %v741 = vpack.c.b16 %v647, %v645
    %v742 = vpack.c.b16 %v650, %v648
    %v743 = vpack.c.b16 %v651, %v649
    %v744 = vpack.c.b16 %v654, %v652
    %v745 = vpack.c.b16 %v655, %v653
    %v746 = vpack.c.b16 %v658, %v656
    %v747 = vpack.c.b16 %v659, %v657
    %v748 = vpack.c.b16 %v662, %v660
    %v749 = vpack.c.b16 %v663, %v661
    %v750 = vpack.c.b16 %v666, %v664
    %v751 = vpack.c.b16 %v667, %v665
    %v752 = vpack.c.b16 %v670, %v668
    %v753 = vpack.c.b16 %v671, %v669
    %v754 = vpack.c.b16 %v674, %v672
    %v755 = vpack.c.b16 %v675, %v673
    %v756 = vpack.c.b16 %v678, %v676
    %v757 = vpack.c.b16 %v679, %v677
    %v758 = vpack.c.b16 %v682, %v680
    %v759 = vpack.c.b16 %v683, %v681
    %v760 = vpack.c.b16 %v686, %v684
    %v761 = vpack.c.b16 %v687, %v685
    %v762 = vpack.c.b16 %v690, %v688
    %v763 = vpack.c.b16 %v691, %v689
    %v764 = vpack.c.b16 %v694, %v692
    %v765 = vpack.c.b16 %v695, %v693
    %v766 = vpack.c.b16 %v698, %v696
    %v767 = vpack.c.b16 %v699, %v697
    %v768 = vpack.c.b16 %v702, %v700
    %v769 = vpack.c.b16 %v703, %v701
    %v770 = vpack.c.b16 %v706, %v704
    %v771 = vpack.c.b16 %v707, %v705
    %836 = vmatprep.subr.bf16.mxu0 %v723
    %837 = vmatpush1.bf16.msra.mxu0 %v722
    %838 = vmatprep.subr.bf16.mxu0 %v721
    %839 = vmatpush1.bf16.msra.mxu0 %v720
    %840 = vmatprep.subr.bf16.mxu0 %v719
    %841 = vmatpush1.bf16.msra.mxu0 %v718
    %842 = vmatprep.subr.bf16.mxu0 %v717
    %843 = vmatpush1.bf16.msra.mxu0 %v716
    %844 = vmatprep.subr.bf16.mxu0 %v715
    %845 = vmatpush1.bf16.msra.mxu0 %v714
    %846 = vmatprep.subr.bf16.mxu0 %v713
    %847 = vmatpush1.bf16.msra.mxu0 %v712
    %848 = vmatprep.subr.bf16.mxu0 %v711
    %849 = vmatpush1.bf16.msra.mxu0 %v710
    %850 = vmatprep.subr.bf16.mxu0 %v709
    %851 = vmatpush1.bf16.msra.mxu0 %v708
    %852 = vmatprep.subr.bf16.mxu0 %v739
    %853 = vmatpush2.bf16.msra.mxu0 %v738
    %854 = vmatprep.subr.bf16.mxu0 %v737
    %855 = vmatpush2.bf16.msra.mxu0 %v736
    %856 = vmatprep.subr.bf16.mxu0 %v735
    %857 = vmatpush2.bf16.msra.mxu0 %v734
    %858 = vmatprep.subr.bf16.mxu0 %v733
    %859 = vmatpush2.bf16.msra.mxu0 %v732
    %860 = vmatprep.subr.bf16.mxu0 %v731
    %861 = vmatpush2.bf16.msra.mxu0 %v730
    %862 = vmatprep.subr.bf16.mxu0 %v729
    %863 = vmatpush2.bf16.msra.mxu0 %v728
    %864 = vmatprep.subr.bf16.mxu0 %v727
    %865 = vmatpush2.bf16.msra.mxu0 %v726
    %866 = vmatprep.subr.bf16.mxu0 %v725
    %867 = vmatpush2.bf16.msra.mxu0 %v724
    %868 = vmatprep.mubr.bf16.mxu0 %v513
    %869 = vmatmul.mubr.bf16.gmra.mxu0 %v512
    %v870 = vpop.f32.mrf.mxu0
    %v871 = vadd.f32 0.0, %v870
    %v872 = vpop.f32.mrf.mxu0
    %v873 = vadd.f32 0.0, %v872
    %v874 = vpop.f32.mrf.mxu0
    %v875 = vadd.f32 0.0, %v874
    %v876 = vpop.f32.mrf.mxu0
    %v877 = vadd.f32 0.0, %v876
    %878 = vdwg.mxu0
    %879 = vmatprep.subr.bf16.mxu0 %v755
    %880 = vmatpush1.bf16.msra.mxu0 %v754
    %881 = vmatprep.subr.bf16.mxu0 %v753
    %882 = vmatpush1.bf16.msra.mxu0 %v752
    %883 = vmatprep.subr.bf16.mxu0 %v751
    %884 = vmatpush1.bf16.msra.mxu0 %v750
    %885 = vmatprep.subr.bf16.mxu0 %v749
    %886 = vmatpush1.bf16.msra.mxu0 %v748
    %887 = vmatprep.subr.bf16.mxu0 %v747
    %888 = vmatpush1.bf16.msra.mxu0 %v746
    %889 = vmatprep.subr.bf16.mxu0 %v745
    %890 = vmatpush1.bf16.msra.mxu0 %v744
    %891 = vmatprep.subr.bf16.mxu0 %v743
    %892 = vmatpush1.bf16.msra.mxu0 %v742
    %893 = vmatprep.subr.bf16.mxu0 %v741
    %894 = vmatpush1.bf16.msra.mxu0 %v740
    %895 = vmatprep.subr.bf16.mxu0 %v771
    %896 = vmatpush2.bf16.msra.mxu0 %v770
    %897 = vmatprep.subr.bf16.mxu0 %v769
    %898 = vmatpush2.bf16.msra.mxu0 %v768
    %899 = vmatprep.subr.bf16.mxu0 %v767
    %900 = vmatpush2.bf16.msra.mxu0 %v766
    %901 = vmatprep.subr.bf16.mxu0 %v765
    %902 = vmatpush2.bf16.msra.mxu0 %v764
    %903 = vmatprep.subr.bf16.mxu0 %v763
    %904 = vmatpush2.bf16.msra.mxu0 %v762
    %905 = vmatprep.subr.bf16.mxu0 %v761
    %906 = vmatpush2.bf16.msra.mxu0 %v760
    %907 = vmatprep.subr.bf16.mxu0 %v759
    %908 = vmatpush2.bf16.msra.mxu0 %v758
    %909 = vmatprep.subr.bf16.mxu0 %v757
    %910 = vmatpush2.bf16.msra.mxu0 %v756
    %911 = vmatprep.mubr.bf16.mxu0 %v515
    %912 = vmatmul.mubr.bf16.gmra.mxu0 %v514
    %v913 = vpop.f32.mrf.mxu0
    %v914 = vadd.f32 %v871, %v913
    %v915 = vpop.f32.mrf.mxu0
    %v916 = vadd.f32 %v873, %v915
    %v917 = vpop.f32.mrf.mxu0
    %v918 = vadd.f32 %v875, %v917
    %v919 = vpop.f32.mrf.mxu0
    %v920 = vadd.f32 %v877, %v919
    %921 = vdwg.mxu0
    %v922 = vpack.c.bf16 %v918, %v914
    %v923 = vpack.c.bf16 %v920, %v916
    %924 = vmatprep.subr.bf16.mxu0 0
    %925 = vmatpush1.bf16.msra.mxu0 0
    %926 = vmatprep.subr.bf16.mxu0 0
    %927 = vmatpush1.bf16.msra.mxu0 0
    %928 = vmatprep.subr.bf16.mxu0 0
    %929 = vmatpush1.bf16.msra.mxu0 0
    %930 = vmatprep.subr.bf16.mxu0 0
    %931 = vmatpush1.bf16.msra.mxu0 0
    %932 = vmatprep.subr.bf16.mxu0 0
    %933 = vmatpush1.bf16.msra.mxu0 0
    %934 = vmatprep.subr.bf16.mxu0 0
    %935 = vmatpush1.bf16.msra.mxu0 0
    %936 = vmatprep.subr.bf16.mxu0 0
    %937 = vmatpush1.bf16.msra.mxu0 0
    %938 = vmatprep.subr.bf16.mxu0 %v923
    %939 = vmatpush1.bf16.msra.mxu0 %v922
    %940 = vmatprep.subr.bf16.mxu0 0
    %941 = vmatpush2.bf16.msra.mxu0 0
    %942 = vmatprep.subr.bf16.mxu0 0
    %943 = vmatpush2.bf16.msra.mxu0 0
    %944 = vmatprep.subr.bf16.mxu0 0
    %945 = vmatpush2.bf16.msra.mxu0 0
    %946 = vmatprep.subr.bf16.mxu0 0
    %947 = vmatpush2.bf16.msra.mxu0 0
    %948 = vmatprep.subr.bf16.mxu0 0
    %949 = vmatpush2.bf16.msra.mxu0 0
    %950 = vmatprep.subr.bf16.mxu0 0
    %951 = vmatpush2.bf16.msra.mxu0 0
    %952 = vmatprep.subr.bf16.mxu0 0
    %953 = vmatpush2.bf16.msra.mxu0 0
    %954 = vmatprep.subr.bf16.mxu0 0
    %955 = vmatpush2.bf16.msra.mxu0 0
    %956 = vmatprep.mubr.bf16.mxu0 0
    %957 = vmatmul.mubr.bf16.gmra.mxu0 %v416
    %v958 = vpop.f32.mrf.mxu0
    %v959 = vadd.f32 0.0, %v958
    %v960 = vpop.f32.mrf.mxu0
    %v961 = vadd.f32 0.0, %v960
    %v962 = vpop.f32.mrf.mxu0
    %v963 = vadd.f32 0.0, %v962
    %v964 = vpop.f32.mrf.mxu0
    %v965 = vadd.f32 0.0, %v964
    %966 = vdwg.mxu0
    %v967 = vmax.f32 %v959, 0.0
    %v968 = vmax.f32 %v961, 0.0
    %v969 = vmax.f32 %v963, 0.0
    %v970 = vmax.f32 %v965, 0.0
    %v971 = vmul.f32 %v967, %v149
    %v972 = vmul.f32 %v968, %v150
    %v973 = vmul.f32 %v969, %v151
    %v974 = vmul.f32 %v970, %v152
    %v975 = vadd.f32 %v971, %v973
    %v976 = vrot.slane %v975, 4
    %v977 = vadd.f32 %v975, %v976
    %v978 = vrot.slane %v977, 2
    %v979 = vadd.f32 %v977, %v978
    %v980 = vrot.slane %v979, 1
    %v981 = vadd.f32 %v979, %v980
    %v982 = vadd.f32 %v972, %v974
    %v983 = vrot.slane %v982, 4
    %v984 = vadd.f32 %v982, %v983
    %v985 = vrot.slane %v984, 2
    %v986 = vadd.f32 %v984, %v985
    %v987 = vrot.slane %v986, 1
    %v988 = vadd.f32 %v986, %v987
    %v991 = vcombine.low %v981, %v988
    %v993 = vunpack.c.l.s4 1966171168
    %v994 = vunpack.c.0.s8 %v993
    %v995 = vlaneseq
    %v996 = vshrl.u32 %v995, 7
    %v997 = vsub.s32 %v994, %v996
    %v998 = vrot.slane %v991, %v997
    %v1000 = vunpack.c.l.s4 1966171168
    %v1001 = vunpack.c.0.s8 %v1000
    %v1002 = vlaneseq
    %v1003 = vshrl.u32 %v1002, 7
    %v1004 = vsub.s32 %v1001, %v1003
    %v1005 = vrot.slane %v998, %v1004
    %v1007 = vlaneseq
    %vm1008 = vcmp.ge.s32.totalorder %v1007, 0
    %vm1009 = vcmp.lt.s32.totalorder %v1007, 256
    %vm1010 = vmand %vm1008, %vm1009
    %1011 = vst.msk [vmem:[%s5] sm:$0x3] %vm1010, %v1005
    // Predicated region
    $region30: #{gcn_classifier_forward.1} parent=1 // pred_check
      _
    $region31: #{gcn_classifier_forward.1} parent=1 // pred_check_branch
      %1013 = sbr.rel (0) target = $region33
    $region32: #{gcn_classifier_forward.1} parent=1 // pred_region
      _
    $region33: #{gcn_classifier_forward.1} parent=1 // pred_fallthru
      _
    // Predicated region
    $region34: #{gcn_classifier_forward.1} parent=1 // pred_check
      _
    $region35: #{gcn_classifier_forward.1} parent=1 // pred_check_branch
      %1015 = sbr.rel (0) target = $region37
    $region36: #{gcn_classifier_forward.1} parent=1 // pred_region
      _
    $region37: #{gcn_classifier_forward.1} parent=1 // pred_fallthru
      _
    %1016 = vsyncpa [#allocation3], 1
    %1017 = vsyncpa [#allocation5], 1

</llo_original>
